<compile_context>
chip_gen: v6e
topology: v6e:2x2x1
jax: 0.10.0
libtpu: 0.0.40
codegen_flags: <defaults>
</compile_context>

<pallas_src>
import functools

import jax
import jax.numpy as jnp
from jax import lax
from jax.experimental import pallas as pl
from jax.experimental.pallas import tpu as pltpu

LANE = 128      # TPU vreg lane width
SUBLANE = 8     # f32 sublane width


def _round_up(v: int, m: int) -> int:
    return (v + m - 1) // m * m


def _vmem_tile_bytes(rows: int, cols: int, itemsize: int = 4) -> int:
    """Bytes a (rows, cols) f32 buffer occupies in (8, 128)-tiled VMEM."""
    return _round_up(max(rows, 1), SUBLANE) * _round_up(max(cols, 1), LANE) * itemsize


def _choose_batch_tile(batch: int) -> int:
    """Pick the batch tile TB (the lane axis of the output)."""
    if batch <= LANE:
        # Single block; the output block's lane dim equals the full (padded)
        # array dim, so it need not be a multiple of 128.
        return _round_up(batch, SUBLANE)
    target = 4096                               # sweep 2048-8192 (overhead-bound)
    tb = min(target, _round_up(batch, LANE))
    if pl.cdiv(batch, tb) < 2 and tb > LANE:
        # Keep >= 2 grid steps so v7x's two TensorCores both get work.
        tb = max(LANE, _round_up(pl.cdiv(batch, 2), LANE))
    return tb


def _mlp_kernel(x_ref, w1_ref, b1_ref, w2_ref, b2_ref, out_ref):
    """Fused fc1 -> ReLU -> fc2 -> sigmoid with the batch on the lane axis.

    x_ref  : (TB, In)  pipelined batch tile
    w1_ref : (H, In)   resident, PyTorch layout
    b1_ref : (H, 1)    resident
    w2_ref : (O, H)    resident, PyTorch layout
    b2_ref : (O, 1)    resident
    out_ref: (O, TB)   lane-dense output tile (batch on lanes)
    """
    # layer 1: h^T = relu(W1 @ x^T + b1) -> (H, TB); MXU, f32 accumulate.
    hT = lax.dot_general(
        w1_ref[...], x_ref[...],
        dimension_numbers=(((1,), (1,)), ((), ())),
        preferred_element_type=jnp.float32)
    hT = jnp.maximum(hT + b1_ref[...], 0.0)                  # VPU, f32

    # layer 2: o^T = sigmoid(W2 @ h^T + b2) -> (O, TB); lane-dense store.
    oT = lax.dot_general(
        w2_ref[...], hT,
        dimension_numbers=(((1,), (0,)), ((), ())),
        preferred_element_type=jnp.float32)
    out_ref[...] = jax.nn.sigmoid(oT + b2_ref[...]).astype(out_ref.dtype)


@functools.partial(jax.jit, static_argnames=("block_b",))
def simple_nn_forward(x, w1, b1, w2, b2, *, block_b=None):
    """Fused SimpleNN forward.

    x : (B, In) float32
    w1: (H, In), b1: (H,)   -- PyTorch nn.Linear parameter layout
    w2: (O, H),  b2: (O,)
    returns (B, O) float32
    """
    B, In = x.shape
    H = w1.shape[0]
    O = w2.shape[0]

    TB = _choose_batch_tile(B) if block_b is None else block_b
    grid = (pl.cdiv(B, TB),)
    B_pad = grid[0] * TB        # only the (tiny) output is padded; x is not

    b1_k = b1.reshape(H, 1)
    b2_k = b2.reshape(O, 1)

    in_specs = [
        # x: pipelined over the batch grid; ragged tail handled as a partial
        # block (garbage rows only feed padded output columns, sliced off).
        pl.BlockSpec((TB, In), lambda i: (i, 0)),
        # Parameters: VMEM-resident (constant block index).  For very large
        # H*In / O on v7x, tile In/O over an extra grid axis and/or
        # single-buffer these blocks (pipeline_mode=pl.Buffered(1)).
        pl.BlockSpec((H, In), lambda i: (0, 0)),
        pl.BlockSpec((H, 1), lambda i: (0, 0)),
        pl.BlockSpec((O, H), lambda i: (0, 0)),
        pl.BlockSpec((O, 1), lambda i: (0, 0)),
    ]
    # Lane-dense output: batch on lanes, one f32 per batch row (no 128x slab).
    out_spec = pl.BlockSpec((O, TB), lambda i: (0, i))

    # VMEM budget: 2x for the pipelined x/out tiles and the (small) resident
    # params (default double-buffering), ~2x TB-wide hidden activation for
    # epilogue temporaries, plus fixed headroom; capped at 32 MiB for v7x.
    est = (2 * _vmem_tile_bytes(TB, In)
           + 2 * _vmem_tile_bytes(O, TB)
           + 2 * (_vmem_tile_bytes(H, In) + _vmem_tile_bytes(H, 1)
                  + _vmem_tile_bytes(O, H) + _vmem_tile_bytes(O, 1))
           + 2 * _vmem_tile_bytes(H, TB))
    vmem_limit = int(min(max(est + (4 << 20), 8 << 20), 32 << 20))

    out_t = pl.pallas_call(
        _mlp_kernel,
        out_shape=jax.ShapeDtypeStruct((O, B_pad), jnp.float32),
        grid=grid,
        in_specs=in_specs,
        out_specs=out_spec,
        compiler_params=pltpu.CompilerParams(
            dimension_semantics=("parallel",),
            vmem_limit_bytes=vmem_limit,
        ),
    )(x, w1, b1_k, w2, b2_k)

    # (O, B_pad) -> (B, O): contiguous slice; transpose is a free reshape for O==1.
    return out_t[:, :B].T


if __name__ == "__main__":
    # Shapes consistent with the module: input_size=4, hidden_size=32, output_size=1.
    B, input_size, hidden_size, output_size = 8, 4, 32, 1

    key = jax.random.PRNGKey(0)
    kx, kw1, kb1, kw2, kb2 = jax.random.split(key, 5)

    x = jax.random.normal(kx, (B, input_size), dtype=jnp.float32)
    # PyTorch nn.Linear stores weight as (out_features, in_features).
    w1 = jax.random.normal(kw1, (hidden_size, input_size), dtype=jnp.float32) * 0.1
    b1 = jax.random.normal(kb1, (hidden_size,), dtype=jnp.float32) * 0.1
    w2 = jax.random.normal(kw2, (output_size, hidden_size), dtype=jnp.float32) * 0.1
    b2 = jax.random.normal(kb2, (output_size,), dtype=jnp.float32) * 0.1

    out = simple_nn_forward(x, w1, b1, w2, b2)
    out = jax.block_until_ready(out)

    # Reference in plain JAX (same math as the PyTorch forward).
    ref = jax.nn.sigmoid(jnp.maximum(x @ w1.T + b1, 0.0) @ w2.T + b2)
    assert out.shape == (B, output_size), out.shape
    assert jnp.allclose(out, ref, atol=1e-5), "mismatch vs reference"

    print("KERNEL_OK")
</pallas_src>

<mosaic_0001>
module attributes {stable_mosaic.version = 11 : i64} {
  func.func @_mlp_kernel(%arg0: i32, %arg1: memref<8x4xf32, #tpu.memory_space<vmem>>, %arg2: memref<32x4xf32, #tpu.memory_space<vmem>>, %arg3: memref<32x1xf32, #tpu.memory_space<vmem>>, %arg4: memref<1x32xf32, #tpu.memory_space<vmem>>, %arg5: memref<1x1xf32, #tpu.memory_space<vmem>>, %arg6: memref<1x8xf32, #tpu.memory_space<vmem>>) attributes {dimension_semantics = [#tpu.dimension_semantics<parallel>], iteration_bounds = array<i64: 1>, scalar_prefetch = 0 : i64, scratch_operands = 0 : i64, tpu.core_type = #tpu.core_type<tc>, window_params = [{transform_indices = @transform_0, window_bounds = array<i64: 8, 4>}, {pipeline_mode = #tpu.pipeline_mode<synchronous>, transform_indices = @transform_1, window_bounds = array<i64: 32, 4>}, {pipeline_mode = #tpu.pipeline_mode<synchronous>, transform_indices = @transform_2, window_bounds = array<i64: 32, 1>}, {pipeline_mode = #tpu.pipeline_mode<synchronous>, transform_indices = @transform_3, window_bounds = array<i64: 1, 32>}, {pipeline_mode = #tpu.pipeline_mode<synchronous>, transform_indices = @transform_4, window_bounds = array<i64: 1, 1>}, {transform_indices = @transform_5, window_bounds = array<i64: 1, 8>}]} {
    %c0 = arith.constant 0 : index
    %c0_0 = arith.constant 0 : index
    %0 = vector.load %arg2[%c0, %c0_0] : memref<32x4xf32, #tpu.memory_space<vmem>>, vector<32x4xf32>
    %c0_1 = arith.constant 0 : index
    %c0_2 = arith.constant 0 : index
    %1 = vector.load %arg1[%c0_1, %c0_2] : memref<8x4xf32, #tpu.memory_space<vmem>>, vector<8x4xf32>
    %cst = arith.constant dense<0.000000e+00> : vector<32x8xf32>
    %2 = tpu.matmul %0, %1, %cst {dimension_numbers = #tpu.dot_dimension_numbers<[1], [1], [0], [0], [0, 0, 1, 0], [], []>} : vector<32x4xf32>, vector<8x4xf32>, vector<32x8xf32> -> vector<32x8xf32>
    %c0_3 = arith.constant 0 : index
    %c0_4 = arith.constant 0 : index
    %3 = vector.load %arg3[%c0_3, %c0_4] : memref<32x1xf32, #tpu.memory_space<vmem>>, vector<32x1xf32>
    %4 = vector.broadcast %3 : vector<32x1xf32> to vector<32x8xf32>
    %5 = arith.addf %2, %4 : vector<32x8xf32>
    %cst_5 = arith.constant 0.000000e+00 : f32
    %6 = vector.broadcast %cst_5 : f32 to vector<32x8xf32>
    %7 = arith.maximumf %5, %6 : vector<32x8xf32>
    %c0_6 = arith.constant 0 : index
    %c0_7 = arith.constant 0 : index
    %8 = vector.load %arg4[%c0_6, %c0_7] : memref<1x32xf32, #tpu.memory_space<vmem>>, vector<1x32xf32>
    %cst_8 = arith.constant dense<0.000000e+00> : vector<1x8xf32>
    %9 = tpu.matmul %8, %7, %cst_8 {dimension_numbers = #tpu.dot_dimension_numbers<[1], [0], [0], [1], [0, 0, 1, 1], [], []>} : vector<1x32xf32>, vector<32x8xf32>, vector<1x8xf32> -> vector<1x8xf32>
    %c0_9 = arith.constant 0 : index
    %c0_10 = arith.constant 0 : index
    %10 = vector.load %arg5[%c0_9, %c0_10] : memref<1x1xf32, #tpu.memory_space<vmem>>, vector<1x1xf32>
    %11 = vector.broadcast %10 : vector<1x1xf32> to vector<1x8xf32>
    %12 = arith.addf %9, %11 : vector<1x8xf32>
    %13 = arith.negf %12 : vector<1x8xf32>
    %14 = math.exp %13 : vector<1x8xf32>
    %cst_11 = arith.constant 1.000000e+00 : f32
    %15 = vector.broadcast %cst_11 : f32 to vector<1x8xf32>
    %16 = arith.addf %15, %14 : vector<1x8xf32>
    %17 = arith.divf %15, %16 : vector<1x8xf32>
    %c0_12 = arith.constant 0 : index
    %c0_13 = arith.constant 0 : index
    %18 = vector.load %arg6[%c0_12, %c0_13] : memref<1x8xf32, #tpu.memory_space<vmem>>, vector<1x8xf32>
    tpu.vector_store %arg6[%c0_12, %c0_13], %17 {strides = array<i32>} : memref<1x8xf32, #tpu.memory_space<vmem>>, vector<1x8xf32>,
    return
  }
  func.func @transform_0(%arg0: i32) -> (i32, i32) {
    %c0_i32 = arith.constant 0 : i32
    %c0_i32_0 = arith.constant 0 : i32
    return %arg0, %c0_i32 : i32, i32
  }
  func.func @transform_1(%arg0: i32) -> (i32, i32) {
    %c0_i32 = arith.constant 0 : i32
    %c0_i32_0 = arith.constant 0 : i32
    %c0_i32_1 = arith.constant 0 : i32
    return %c0_i32, %c0_i32_0 : i32, i32
  }
  func.func @transform_2(%arg0: i32) -> (i32, i32) {
    %c0_i32 = arith.constant 0 : i32
    %c0_i32_0 = arith.constant 0 : i32
    %c0_i32_1 = arith.constant 0 : i32
    return %c0_i32, %c0_i32_0 : i32, i32
  }
  func.func @transform_3(%arg0: i32) -> (i32, i32) {
    %c0_i32 = arith.constant 0 : i32
    %c0_i32_0 = arith.constant 0 : i32
    %c0_i32_1 = arith.constant 0 : i32
    return %c0_i32, %c0_i32_0 : i32, i32
  }
  func.func @transform_4(%arg0: i32) -> (i32, i32) {
    %c0_i32 = arith.constant 0 : i32
    %c0_i32_0 = arith.constant 0 : i32
    %c0_i32_1 = arith.constant 0 : i32
    return %c0_i32, %c0_i32_0 : i32, i32
  }
  func.func @transform_5(%arg0: i32) -> (i32, i32) {
    %c0_i32 = arith.constant 0 : i32
    %c0_i32_0 = arith.constant 0 : i32
    return %c0_i32, %arg0 : i32, i32
  }
}

</mosaic_0001>

<llo_original>
// kernel: simple_nn_forward.1
$region0: #{simple_nn_forward.1}
  #allocation0 [shape = 'u32[]', space=smem, size = 0x4, offset = 0x4, fixed_abs, tag = 'smem constant byte address 0x4 - core index']
  #allocation1 [shape = 'u32[144,128]{1,0:T(1,128)}', space=vmem, size = 0x12000, scoped, tag = 'internal scratch']
  #allocation2 [shape = 'f32[1,1]{1,0:T(1,128)S(1)}', space=vmem, size = 0x200, scoped, tag = 'scoped memory for simple_nn_forward.1']
  %s0 = inlined_call_operand.vmem [shape: f32[8,4], index: 0, kind: input, shape index: {}]
  %s1 = inlined_call_operand.vmem [shape: f32[32,4], index: 1, kind: input, shape index: {}]
  %s2 = inlined_call_operand.vmem [shape: f32[32,1], index: 2, kind: input, shape index: {}]
  %s3 = inlined_call_operand.vmem [shape: f32[1,32], index: 3, kind: input, shape index: {}]
  %s4 = inlined_call_operand.<no memory space> [shape: f32[1,1], index: 4, kind: input, shape index: {}]
  %s5 = inlined_call_operand.hbm [shape: f32[1,8], index: 5, kind: output, shape index: {}]
  %s6 = sld [smem:[#allocation0]]
  $region30: #{simple_nn_forward.1} parent=0
    _
  %s8 = ssub.s32 1, %s6
  %s9 = scalar_select 0, %s8, %s6
  %v10 = vstv %s4
  %11 = vst [vmem:[#allocation2] sm:$0x1] %v10
  $region1: #{simple_nn_forward.1} parent=0
    #allocation3 [shape = 'u8[512]{0}', space=vmem, size = 0x400, scoped, tag = 'output window, operand 0, single buffered']
    #allocation4 [shape = 's32[1]{0}', space=sflag, size = 0x4, scoped, tag = 'scoped memory for simple_nn_forward.1']
    %12 = vsyncpa [#allocation4], 0
    // Predicated region
    $region2: #{simple_nn_forward.1} parent=1 // pred_check
      _
    $region3: #{simple_nn_forward.1} parent=1 // pred_check_branch
      %14 = sbr.rel (0) target = $region5
    $region4: #{simple_nn_forward.1} parent=1 // pred_region
      _
    $region5: #{simple_nn_forward.1} parent=1 // pred_fallthru
      _
    // Predicated region
    $region6: #{simple_nn_forward.1} parent=1 // pred_check
      _
    $region7: #{simple_nn_forward.1} parent=1 // pred_check_branch
      %16 = sbr.rel (0) target = $region9
    $region8: #{simple_nn_forward.1} parent=1 // pred_region
      _
    $region9: #{simple_nn_forward.1} parent=1 // pred_fallthru
      _
    // Predicated region
    $region10: #{simple_nn_forward.1} parent=1 // pred_check
      _
    $region11: #{simple_nn_forward.1} parent=1 // pred_check_branch
      %18 = sbr.rel (0) target = $region13
    $region12: #{simple_nn_forward.1} parent=1 // pred_region
      _
    $region13: #{simple_nn_forward.1} parent=1 // pred_fallthru
      _
    // Predicated region
    $region14: #{simple_nn_forward.1} parent=1 // pred_check
      _
    $region15: #{simple_nn_forward.1} parent=1 // pred_check_branch
      %20 = sbr.rel (0) target = $region17
    $region16: #{simple_nn_forward.1} parent=1 // pred_region
      _
    $region17: #{simple_nn_forward.1} parent=1 // pred_fallthru
      _
    // Predicated region
    $region18: #{simple_nn_forward.1} parent=1 // pred_check
      _
    $region19: #{simple_nn_forward.1} parent=1 // pred_check_branch
      %22 = sbr.rel (0) target = $region21
    $region20: #{simple_nn_forward.1} parent=1 // pred_region
      _
    $region21: #{simple_nn_forward.1} parent=1 // pred_fallthru
      _
    %v23 = vld [vmem:[%s1] sm:$0xff]
    %v24 = vld [vmem:[%s1 + $0x8] sm:$0xff]
    %v25 = vld [vmem:[%s1 + $0x10] sm:$0xff]
    %v26 = vld [vmem:[%s1 + $0x18] sm:$0xff]
    %v27 = vld [vmem:[%s0] sm:$0xff]
    %v28 = vld [vmem:[%s2] sm:$0xff]
    %v29 = vld [vmem:[%s2 + $0x8] sm:$0xff]
    %v30 = vld [vmem:[%s2 + $0x10] sm:$0xff]
    %v31 = vld [vmem:[%s2 + $0x18] sm:$0xff]
    %33 = vset.pattern.permute.xlu0 0
    %34 = vperm.xlu0 %33, %v28
    %v35 = vpop.permute.xlu0 %34
    %38 = vset.pattern.permute.xlu0 0
    %39 = vperm.xlu0 %38, %v29
    %v40 = vpop.permute.xlu0 %39
    %43 = vset.pattern.permute.xlu0 0
    %44 = vperm.xlu0 %43, %v30
    %v45 = vpop.permute.xlu0 %44
    %48 = vset.pattern.permute.xlu0 0
    %49 = vperm.xlu0 %48, %v31
    %v50 = vpop.permute.xlu0 %49
    %vm52 = vcmask 31744
    %v54 = vsel %vm52, %v23, 0
    %v57 = vsel %vm52, %v24, 0
    %v60 = vsel %vm52, %v25, 0
    %v63 = vsel %vm52, %v26, 0
    %v66 = vsel %vm52, %v27, 0
    %68 = vmatprep.subr.mxu0 0.0
    %69 = vmatpush1.xpose.msra.mxu0 0.0
    %70 = vmatprep.subr.mxu0 0.0
    %71 = vmatpush1.xpose.msra.mxu0 0.0
    %72 = vmatprep.subr.mxu0 0.0
    %73 = vmatpush1.xpose.msra.mxu0 0.0
    %74 = vmatprep.subr.mxu0 0.0
    %75 = vmatpush1.xpose.msra.mxu0 0.0
    %76 = vmatprep.subr.mxu0 0.0
    %77 = vmatpush1.xpose.msra.mxu0 0.0
    %78 = vmatprep.subr.mxu0 0.0
    %79 = vmatpush1.xpose.msra.mxu0 0.0
    %80 = vmatprep.subr.mxu0 0.0
    %81 = vmatpush1.xpose.msra.mxu0 0.0
    %82 = vmatprep.subr.mxu0 0.0
    %83 = vmatpush1.xpose.msra.mxu0 0.0
    %84 = vmatprep.subr.mxu0 0.0
    %85 = vmatpush1.xpose.msra.mxu0 0.0
    %86 = vmatprep.subr.mxu0 0.0
    %87 = vmatpush1.xpose.msra.mxu0 0.0
    %88 = vmatprep.subr.mxu0 0.0
    %89 = vmatpush1.xpose.msra.mxu0 0.0
    %90 = vmatprep.subr.mxu0 0.0
    %91 = vmatpush1.xpose.msra.mxu0 0.0
    %92 = vmatprep.subr.mxu0 0.0
    %93 = vmatpush1.xpose.msra.mxu0 0.0
    %94 = vmatprep.subr.mxu0 0.0
    %95 = vmatpush1.xpose.msra.mxu0 0.0
    %96 = vmatprep.subr.mxu0 0.0
    %97 = vmatpush1.xpose.msra.mxu0 0.0
    %98 = vmatprep.subr.mxu0 0.0
    %99 = vmatpush1.xpose.msra.mxu0 %v66
    %100 = vmatprep.subr.mxu0 0.0
    %101 = vmatpush2.xpose.msra.mxu0 0.0
    %102 = vmatprep.subr.mxu0 0.0
    %103 = vmatpush2.xpose.msra.mxu0 0.0
    %104 = vmatprep.subr.mxu0 0.0
    %105 = vmatpush2.xpose.msra.mxu0 0.0
    %106 = vmatprep.subr.mxu0 0.0
    %107 = vmatpush2.xpose.msra.mxu0 0.0
    %108 = vmatprep.subr.mxu0 0.0
    %109 = vmatpush2.xpose.msra.mxu0 0.0
    %110 = vmatprep.subr.mxu0 0.0
    %111 = vmatpush2.xpose.msra.mxu0 0.0
    %112 = vmatprep.subr.mxu0 0.0
    %113 = vmatpush2.xpose.msra.mxu0 0.0
    %114 = vmatprep.subr.mxu0 0.0
    %115 = vmatpush2.xpose.msra.mxu0 0.0
    %116 = vmatprep.subr.mxu0 0.0
    %117 = vmatpush2.xpose.msra.mxu0 0.0
    %118 = vmatprep.subr.mxu0 0.0
    %119 = vmatpush2.xpose.msra.mxu0 0.0
    %120 = vmatprep.subr.mxu0 0.0
    %121 = vmatpush2.xpose.msra.mxu0 0.0
    %122 = vmatprep.subr.mxu0 0.0
    %123 = vmatpush2.xpose.msra.mxu0 0.0
    %124 = vmatprep.subr.mxu0 0.0
    %125 = vmatpush2.xpose.msra.mxu0 0.0
    %126 = vmatprep.subr.mxu0 0.0
    %127 = vmatpush2.xpose.msra.mxu0 0.0
    %128 = vmatprep.subr.mxu0 0.0
    %129 = vmatpush2.xpose.msra.mxu0 0.0
    %130 = vmatprep.subr.mxu0 0.0
    %131 = vmatpush2.xpose.msra.mxu0 0.0
    %132 = vmatprep.mubr.f32.mxu0 0.0
    %133 = vmatmul.mubr.f32.gmra.mxu0 %v54
    %v134 = vpop.f32.mrf.mxu0
    %v135 = vadd.f32 %v35, %v134
    %v136 = vpop.f32.mrf.mxu0
    %137 = vmatprep.mubr.f32.mxu0 0.0
    %138 = vmatmul.mubr.f32.gmra.mxu0 %v57
    %v139 = vpop.f32.mrf.mxu0
    %v140 = vadd.f32 %v40, %v139
    %v141 = vpop.f32.mrf.mxu0
    %142 = vmatprep.mubr.f32.mxu0 0.0
    %143 = vmatmul.mubr.f32.gmra.mxu0 %v60
    %v144 = vpop.f32.mrf.mxu0
    %v145 = vadd.f32 %v45, %v144
    %v146 = vpop.f32.mrf.mxu0
    %147 = vmatprep.mubr.f32.mxu0 0.0
    %148 = vmatmul.mubr.f32.gmra.mxu0 %v63
    %v149 = vpop.f32.mrf.mxu0
    %v150 = vadd.f32 %v50, %v149
    %v151 = vpop.f32.mrf.mxu0
    %152 = vdwg.mxu0
    %v153 = vmax.f32 %v135, 0.0
    %v154 = vmax.f32 %v140, 0.0
    %v155 = vmax.f32 %v145, 0.0
    %v156 = vmax.f32 %v150, 0.0
    %v157 = vld [vmem:[%s3] sm:$0x1]
    %v158 = vld [vmem:[#allocation2] sm:$0x1]
    %160 = vset.pattern.permute.xlu0 0
    %161 = vperm.xlu0 %160, %v158
    %v162 = vpop.permute.xlu0 %161
    %v164 = vlaneseq
    %v165 = vshrl.u32 %v164, 7
    %v166 = vsub.s32 0, %v165
    %v167 = vrot.slane %v162, %v166
    %vm168 = vcmask 261120
    %v170 = vsel %vm168, %v157, 0
    %172 = vmatprep.subr.mxu0 0.0
    %173 = vmatpush1.msra.mxu0 0.0
    %174 = vmatprep.subr.mxu0 0.0
    %175 = vmatpush1.msra.mxu0 0.0
    %176 = vmatprep.subr.mxu0 0.0
    %177 = vmatpush1.msra.mxu0 0.0
    %178 = vmatprep.subr.mxu0 0.0
    %179 = vmatpush1.msra.mxu0 0.0
    %180 = vmatprep.subr.mxu0 0.0
    %181 = vmatpush1.msra.mxu0 0.0
    %182 = vmatprep.subr.mxu0 0.0
    %183 = vmatpush1.msra.mxu0 0.0
    %184 = vmatprep.subr.mxu0 0.0
    %185 = vmatpush1.msra.mxu0 0.0
    %186 = vmatprep.subr.mxu0 0.0
    %187 = vmatpush1.msra.mxu0 0.0
    %188 = vmatprep.subr.mxu0 0.0
    %189 = vmatpush1.msra.mxu0 0.0
    %190 = vmatprep.subr.mxu0 0.0
    %191 = vmatpush1.msra.mxu0 0.0
    %192 = vmatprep.subr.mxu0 0.0
    %193 = vmatpush1.msra.mxu0 0.0
    %194 = vmatprep.subr.mxu0 0.0
    %195 = vmatpush1.msra.mxu0 0.0
    %196 = vmatprep.subr.mxu0 0.0
    %197 = vmatpush1.msra.mxu0 %v156
    %198 = vmatprep.subr.mxu0 0.0
    %199 = vmatpush1.msra.mxu0 %v155
    %200 = vmatprep.subr.mxu0 0.0
    %201 = vmatpush1.msra.mxu0 %v154
    %202 = vmatprep.subr.mxu0 0.0
    %203 = vmatpush1.msra.mxu0 %v153
    %204 = vmatprep.subr.mxu0 0.0
    %205 = vmatpush2.msra.mxu0 0.0
    %206 = vmatprep.subr.mxu0 0.0
    %207 = vmatpush2.msra.mxu0 0.0
    %208 = vmatprep.subr.mxu0 0.0
    %209 = vmatpush2.msra.mxu0 0.0
    %210 = vmatprep.subr.mxu0 0.0
    %211 = vmatpush2.msra.mxu0 0.0
    %212 = vmatprep.subr.mxu0 0.0
    %213 = vmatpush2.msra.mxu0 0.0
    %214 = vmatprep.subr.mxu0 0.0
    %215 = vmatpush2.msra.mxu0 0.0
    %216 = vmatprep.subr.mxu0 0.0
    %217 = vmatpush2.msra.mxu0 0.0
    %218 = vmatprep.subr.mxu0 0.0
    %219 = vmatpush2.msra.mxu0 0.0
    %220 = vmatprep.subr.mxu0 0.0
    %221 = vmatpush2.msra.mxu0 0.0
    %222 = vmatprep.subr.mxu0 0.0
    %223 = vmatpush2.msra.mxu0 0.0
    %224 = vmatprep.subr.mxu0 0.0
    %225 = vmatpush2.msra.mxu0 0.0
    %226 = vmatprep.subr.mxu0 0.0
    %227 = vmatpush2.msra.mxu0 0.0
    %228 = vmatprep.subr.mxu0 0.0
    %229 = vmatpush2.msra.mxu0 0.0
    %230 = vmatprep.subr.mxu0 0.0
    %231 = vmatpush2.msra.mxu0 0.0
    %232 = vmatprep.subr.mxu0 0.0
    %233 = vmatpush2.msra.mxu0 0.0
    %234 = vmatprep.subr.mxu0 0.0
    %235 = vmatpush2.msra.mxu0 0.0
    %236 = vmatprep.mubr.f32.mxu0 0.0
    %237 = vmatmul.mubr.f32.gmra.mxu0 %v170
    %v238 = vpop.f32.mrf.mxu0
    %v239 = vadd.f32 %v167, %v238
    %v240 = vpop.f32.mrf.mxu0
    %241 = vdwg.mxu0
    %v242 = vxor.u32 %v239, 2147483648
    %v243 = vmul.f32 %v242, 1.442695
    %v244 = vpow.pop %v243
    %v245 = vadd.f32 %v244, 1.0
    %v246 = vrcp.pop %v245
    %v247 = vmul.f32 1.0, %v246
    %vm248 = vcmask 57344
    %249 = vst.msk [vmem:[#allocation3] sm:$0x1] %vm248, %v247
    // Predicated region
    $region22: #{simple_nn_forward.1} parent=1 // pred_check
      _
    $region23: #{simple_nn_forward.1} parent=1 // pred_check_branch
      %251 = sbr.rel (0) target = $region25
    $region24: #{simple_nn_forward.1} parent=1 // pred_region
      %s253 = ssub.s32 16, 16
      %254 = vsyncadd [#allocation4], %s253
      %s256 = sshll.u32 [#allocation3], 4
      %s257 = int_to_ptr.vmem [resolvable:$true] %s256
      %259 = dma.vmem_to_hbm [thread:$0]  %s257, 16, %s5, [#allocation4]
    $region25: #{simple_nn_forward.1} parent=1 // pred_fallthru
      _
    // Predicated region
    $region26: #{simple_nn_forward.1} parent=1 // pred_check
      _
    $region27: #{simple_nn_forward.1} parent=1 // pred_check_branch
      %261 = sbr.rel (0) target = $region29
    $region28: #{simple_nn_forward.1} parent=1 // pred_region
      %262 = dma.done [#allocation4], 16
    $region29: #{simple_nn_forward.1} parent=1 // pred_fallthru
      _
    %263 = vsyncpa [#allocation4], 1

</llo_original>
